<compile_context>
chip_gen: v6e
topology: v6e:2x2x1
jax: 0.10.0
libtpu: 0.0.40
codegen_flags: <defaults>
</compile_context>

<pallas_src>
import dataclasses
from functools import partial

import jax
import jax.numpy as jnp
from jax.experimental import pallas as pl
from jax.experimental.pallas import tpu as pltpu


def _round_up(x, m):
    return ((x + m - 1) // m) * m


def _packed_linear_kernel(x_ref, w_ref, s_ref, o_ref, *scratch, cast_weight_to_bf16):
    """x_ref: (tm, tk) f32/bf16, w_ref: (tk, tn) fp8, s_ref: (1, tn) f32, o_ref: (tm, tn)."""
    # With f32 output there is no scratch: the output tile is resident across the
    # K grid axis (its block index is constant over k), so it is the accumulator.
    acc_ref = scratch[0] if scratch else o_ref
    k = pl.program_id(2)

    # fp8 -> bf16 is an exact cast; bf16 x bf16 hits the native MXU rate on
    # v5e/v6e with an f32 accumulator.  On v7x set cast_weight_to_bf16=False to
    # feed fp8 to the MXU directly.
    w = w_ref[...]
    if cast_weight_to_bf16:
        w = w.astype(jnp.bfloat16)
    # x cast is a no-op when the wrapper already produced bf16; otherwise it is a
    # VPU cast hidden under MXU slack (only taken when x is read a single time).
    part = jnp.dot(x_ref[...].astype(jnp.bfloat16), w,
                   preferred_element_type=jnp.float32)

    @pl.when(k == 0)
    def _():
        acc_ref[...] = part

    @pl.when(k != 0)
    def _():
        acc_ref[...] += part

    @pl.when(k == pl.num_programs(2) - 1)
    def _():
        # Per-output-channel dequant scale applied once on the f32 accumulator.
        o_ref[...] = (acc_ref[...] * s_ref[...]).astype(o_ref.dtype)


@dataclasses.dataclass(frozen=True)
class PackedLinearWeights:
    """One-time (load-time) layout of the packed weight: no per-call transpose/pad."""
    w_kn: jax.Array       # [K_pad, N_pad] fp8, contraction-major
    scale_row: jax.Array  # [1, N_pad] f32
    n: int
    k: int
    tn: int
    tk: int


def prepare_packed_linear(weight, weight_scale, *, tn=512, tk=1024):
    """weight: [N, K] fp8, weight_scale: [N, 1] f32 -> cached kernel-ready layout."""
    N, K = weight.shape
    assert weight_scale.shape == (N, 1)
    tn = min(tn, _round_up(N, 128))
    tk = min(tk, _round_up(K, 128))
    N_pad = _round_up(N, tn)
    K_pad = _round_up(K, tk)
    # Contraction-major [K, N] fp8 weight: no in-kernel transpose, lane-dense output.
    w_kn = weight.T
    if K_pad != K or N_pad != N:
        w_kn = jnp.pad(w_kn, ((0, K_pad - K), (0, N_pad - N)))
    s_row = weight_scale.reshape(1, N).astype(jnp.float32)
    if N_pad != N:
        s_row = jnp.pad(s_row, ((0, 0), (0, N_pad - N)))
    return PackedLinearWeights(w_kn=w_kn, scale_row=s_row, n=N, k=K, tn=tn, tk=tk)


def packed_linear(x, pw: PackedLinearWeights, *, tm=512, out_dtype=jnp.float32,
                  native_fp8_matmul=False):
    """x: [M, K] -> [M, N] out_dtype, using the prepared fp8 weight layout."""
    M, K = x.shape
    assert K == pw.k
    K_pad, N_pad = pw.w_kn.shape
    tk, tn = pw.tk, pw.tn

    tm = min(tm, _round_up(M, 8))
    M_pad = _round_up(M, tm)
    grid_m = M_pad // tm
    grid_k = K_pad // tk

    # v7x megacore balance: with a single i block, expose >=2 j blocks so both
    # TensorCores get work (halving keeps tn a 128-multiple divisor of N_pad).
    if grid_m == 1:
        while N_pad // tn < 2 and tn >= 256:
            tn //= 2
    grid_n = N_pad // tn

    # Activation layout: when each x tile is read once (single N tile), keep x in
    # its original dtype and cast in-kernel (avoids a separate HBM pass over x);
    # otherwise pre-cast to bf16 once so the grid_n repeated reads are half-width.
    x_in = x
    if grid_n > 1 and x.dtype != jnp.bfloat16:
        x_in = x.astype(jnp.bfloat16)
    if M_pad != M or K_pad != K:
        x_in = jnp.pad(x_in, ((0, M_pad - M), (0, K_pad - K)))

    use_scratch = out_dtype != jnp.float32   # low-precision output needs an f32 acc
    # Weight-streaming (decode) shapes: deeper weight pipeline hides the weight DMA
    # on slower HBM (v5e).
    weight_stream = grid_m == 1 and grid_k >= 3
    if weight_stream:
        w_spec = pl.BlockSpec((tk, tn), lambda i, j, k: (k, j),
                              pipeline_mode=pl.Buffered(3))
    else:
        w_spec = pl.BlockSpec((tk, tn), lambda i, j, k: (k, j))

    # Explicit VMEM budget (double-buffered inputs/outputs + optional acc + scale).
    x_bytes = jnp.dtype(x_in.dtype).itemsize
    out_bytes = jnp.dtype(out_dtype).itemsize
    n_w_buf = 3 if weight_stream else 2
    vmem_needed = (2 * tm * tk * x_bytes
                   + n_w_buf * tk * tn * 1
                   + 2 * tm * tn * out_bytes
                   + (tm * tn * 4 if use_scratch else 0)
                   + 2 * 8 * tn * 4)
    vmem_limit = int(min(max(vmem_needed + (4 << 20), 32 << 20), 56 << 20))

    cost = pl.CostEstimate(
        flops=2 * M_pad * N_pad * K_pad,
        transcendentals=0,
        bytes_accessed=(grid_n * M_pad * K_pad * x_bytes      # x re-read per N tile
                        + grid_m * K_pad * N_pad * 1          # weight re-read per M tile
                        + M_pad * N_pad * out_bytes),
    )

    kernel = partial(_packed_linear_kernel,
                     cast_weight_to_bf16=not native_fp8_matmul)
    # TODO(synk): auto-select native_fp8_matmul=True on v7x (fp8-capable MXU) via a
    # hardware query instead of a caller flag.

    out = pl.pallas_call(
        kernel,
        out_shape=jax.ShapeDtypeStruct((M_pad, N_pad), out_dtype),
        grid_spec=pltpu.PrefetchScalarGridSpec(
            num_scalar_prefetch=0,
            grid=(grid_m, grid_n, grid_k),
            in_specs=[
                pl.BlockSpec((tm, tk), lambda i, j, k: (i, k)),   # activations
                w_spec,                                           # fp8 weight [K, N]
                pl.BlockSpec((1, tn), lambda i, j, k: (0, j)),    # per-channel scale
            ],
            out_specs=pl.BlockSpec((tm, tn), lambda i, j, k: (i, j)),
            scratch_shapes=([pltpu.VMEM((tm, tn), jnp.float32)] if use_scratch else []),
        ),
        compiler_params=pltpu.CompilerParams(
            dimension_semantics=("parallel", "parallel", "arbitrary"),
            vmem_limit_bytes=vmem_limit),
        cost_estimate=cost,
    )(x_in, pw.w_kn, pw.scale_row)

    if M_pad != M or N_pad != pw.n:
        out = out[:M, :pw.n]
    return out


if __name__ == "__main__":
    # TODO(synk): PackedLinear.forward literally raises NotImplementedError; we run
    # the dequantized linear its packed (weight, weight_scale) pair implies.
    key = jax.random.PRNGKey(0)
    kx, kw = jax.random.split(key)

    B, S, K, N = 2, 8, 32, 64                      # batch, seq, in_features, out_features
    x = jax.random.normal(kx, (B, S, K), dtype=jnp.float32)

    # Deterministically "pack" an fp8 weight + per-output-channel scale (as the
    # module's __init__ would receive them from a quantizer).
    w_f32 = jax.random.normal(kw, (N, K), dtype=jnp.float32)
    amax = jnp.max(jnp.abs(w_f32), axis=1, keepdims=True)
    weight_scale = (amax / 448.0).astype(jnp.float32)           # e4m3 max magnitude ~448
    weight = (w_f32 / weight_scale).astype(jnp.float8_e4m3fn)   # packed fp8 weight [N, K]

    # One-time weight layout (done at load/packing time, not per forward call).
    pw = prepare_packed_linear(weight, weight_scale)

    x2d = x.reshape(B * S, K)
    y = packed_linear(x2d, pw)
    y = jax.block_until_ready(y).reshape(B, S, N)

    # Pure-JAX f32 reference of the same dequantized linear.
    y_ref = (x2d.astype(jnp.float32)
             @ (weight.astype(jnp.float32) * weight_scale).T).reshape(B, S, N)
    assert y.shape == (B, S, N) and y.dtype == jnp.float32
    # Kernel feeds bf16 into the MXU (f32 accumulate), so allow bf16-level tolerance.
    assert jnp.allclose(y, y_ref, atol=5e-2, rtol=5e-2)

    print("KERNEL_OK")
</pallas_src>

<mosaic_0001>
module attributes {stable_mosaic.version = 11 : i64} {
  func.func @_packed_linear_kernel(%arg0: i32, %arg1: i32, %arg2: i32, %arg3: memref<16x128xf32, #tpu.memory_space<vmem>>, %arg4: memref<128x128xf8E4M3FN, #tpu.memory_space<vmem>>, %arg5: memref<1x128xf32, #tpu.memory_space<vmem>>, %arg6: memref<16x128xf32, #tpu.memory_space<vmem>>) attributes {dimension_semantics = [#tpu.dimension_semantics<parallel>, #tpu.dimension_semantics<parallel>, #tpu.dimension_semantics<arbitrary>], iteration_bounds = array<i64: 1, 1, 1>, scalar_prefetch = 0 : i64, scratch_operands = 0 : i64, tpu.core_type = #tpu.core_type<tc>, window_params = [{transform_indices = @transform_0, window_bounds = array<i64: 16, 128>}, {transform_indices = @transform_1, window_bounds = array<i64: 128, 128>}, {transform_indices = @transform_2, window_bounds = array<i64: 1, 128>}, {transform_indices = @transform_3, window_bounds = array<i64: 16, 128>}]} {
    %c0 = arith.constant 0 : index
    %c0_0 = arith.constant 0 : index
    %0 = vector.load %arg4[%c0, %c0_0] : memref<128x128xf8E4M3FN, #tpu.memory_space<vmem>>, vector<128x128xf8E4M3FN>
    %1 = arith.extf %0 : vector<128x128xf8E4M3FN> to vector<128x128xbf16>
    %c0_1 = arith.constant 0 : index
    %c0_2 = arith.constant 0 : index
    %2 = vector.load %arg3[%c0_1, %c0_2] : memref<16x128xf32, #tpu.memory_space<vmem>>, vector<16x128xf32>
    %3 = arith.truncf %2 : vector<16x128xf32> to vector<16x128xbf16>
    %cst = arith.constant dense<0.000000e+00> : vector<16x128xf32>
    %4 = tpu.matmul %3, %1, %cst {dimension_numbers = #tpu.dot_dimension_numbers<[1], [0], [0], [1], [0, 0, 1, 1], [], []>} : vector<16x128xbf16>, vector<128x128xbf16>, vector<16x128xf32> -> vector<16x128xf32>
    %c0_i32 = arith.constant 0 : i32
    %5 = arith.cmpi eq, %arg2, %c0_i32 : i32
    %6 = arith.extui %5 : i1 to i32
    %c0_i32_3 = arith.constant 0 : i32
    %7 = arith.cmpi ne, %6, %c0_i32_3 : i32
    scf.if %7 {
      %c0_8 = arith.constant 0 : index
      %c0_9 = arith.constant 0 : index
      %14 = vector.load %arg6[%c0_8, %c0_9] : memref<16x128xf32, #tpu.memory_space<vmem>>, vector<16x128xf32>
      tpu.vector_store %arg6[%c0_8, %c0_9], %4 {strides = array<i32>} : memref<16x128xf32, #tpu.memory_space<vmem>>, vector<16x128xf32>,
    } else {
    }
    %c0_i32_4 = arith.constant 0 : i32
    %8 = arith.cmpi ne, %arg2, %c0_i32_4 : i32
    %9 = arith.extui %8 : i1 to i32
    %c0_i32_5 = arith.constant 0 : i32
    %10 = arith.cmpi ne, %9, %c0_i32_5 : i32
    scf.if %10 {
      %c0_8 = arith.constant 0 : index
      %c0_9 = arith.constant 0 : index
      %14 = vector.load %arg6[%c0_8, %c0_9] : memref<16x128xf32, #tpu.memory_space<vmem>>, vector<16x128xf32>
      %15 = arith.addf %14, %4 : vector<16x128xf32>
      %c0_10 = arith.constant 0 : index
      %c0_11 = arith.constant 0 : index
      %16 = vector.load %arg6[%c0_10, %c0_11] : memref<16x128xf32, #tpu.memory_space<vmem>>, vector<16x128xf32>
      tpu.vector_store %arg6[%c0_10, %c0_11], %15 {strides = array<i32>} : memref<16x128xf32, #tpu.memory_space<vmem>>, vector<16x128xf32>,
    } else {
    }
    %c0_i32_6 = arith.constant 0 : i32
    %11 = arith.cmpi eq, %arg2, %c0_i32_6 : i32
    %12 = arith.extui %11 : i1 to i32
    %c0_i32_7 = arith.constant 0 : i32
    %13 = arith.cmpi ne, %12, %c0_i32_7 : i32
    scf.if %13 {
      %c0_8 = arith.constant 0 : index
      %c0_9 = arith.constant 0 : index
      %14 = vector.load %arg6[%c0_8, %c0_9] : memref<16x128xf32, #tpu.memory_space<vmem>>, vector<16x128xf32>
      %c0_10 = arith.constant 0 : index
      %c0_11 = arith.constant 0 : index
      %15 = vector.load %arg5[%c0_10, %c0_11] : memref<1x128xf32, #tpu.memory_space<vmem>>, vector<1x128xf32>
      %16 = vector.broadcast %15 : vector<1x128xf32> to vector<16x128xf32>
      %17 = arith.mulf %14, %16 : vector<16x128xf32>
      %c0_12 = arith.constant 0 : index
      %c0_13 = arith.constant 0 : index
      %18 = vector.load %arg6[%c0_12, %c0_13] : memref<16x128xf32, #tpu.memory_space<vmem>>, vector<16x128xf32>
      tpu.vector_store %arg6[%c0_12, %c0_13], %17 {strides = array<i32>} : memref<16x128xf32, #tpu.memory_space<vmem>>, vector<16x128xf32>,
    } else {
    }
    return
  }
  func.func @transform_0(%arg0: i32, %arg1: i32, %arg2: i32) -> (i32, i32) {
    %c0_i32 = arith.constant 0 : i32
    return %arg0, %arg2 : i32, i32
  }
  func.func @transform_1(%arg0: i32, %arg1: i32, %arg2: i32) -> (i32, i32) {
    %c0_i32 = arith.constant 0 : i32
    return %arg2, %arg1 : i32, i32
  }
  func.func @transform_2(%arg0: i32, %arg1: i32, %arg2: i32) -> (i32, i32) {
    %c0_i32 = arith.constant 0 : i32
    %c0_i32_0 = arith.constant 0 : i32
    return %c0_i32, %arg1 : i32, i32
  }
  func.func @transform_3(%arg0: i32, %arg1: i32, %arg2: i32) -> (i32, i32) {
    %c0_i32 = arith.constant 0 : i32
    return %arg0, %arg1 : i32, i32
  }
}

</mosaic_0001>

<llo_original>
// kernel: tpu_custom_call.1
$region0: #{tpu_custom_call.1}
  #allocation0 [shape = 'u32[]', space=smem, size = 0x4, offset = 0x4, fixed_abs, tag = 'smem constant byte address 0x4 - core index']
  #allocation1 [shape = 'u32[144,128]{1,0:T(1,128)}', space=vmem, size = 0x12000, scoped, tag = 'internal scratch']
  %s0 = inlined_call_operand.hbm [shape: f32[16,128], index: 0, kind: input, shape index: {}]
  %s1 = inlined_call_operand.hbm [shape: f8e4m3fn[128,128], index: 1, kind: input, shape index: {}]
  %s2 = inlined_call_operand.vmem [shape: f32[1,128], index: 2, kind: input, shape index: {}]
  %s3 = inlined_call_operand.hbm [shape: f32[16,128], index: 3, kind: output, shape index: {}]
  %s4 = sld [smem:[#allocation0]]
  $region58: #{tpu_custom_call.1} parent=0
    _
  %s6 = ssub.s32 1, %s4
  %s7 = scalar_select 0, %s6, %s4
  $region1: #{tpu_custom_call.1} parent=0
    #allocation2 [shape = 'u8[8192]{0}', space=vmem, size = 0x2000, scoped, tag = 'input window, operand 0, single buffered']
    #allocation3 [shape = 's32[1]{0}', space=sflag, size = 0x4, scoped, tag = 'scoped memory for tpu_custom_call.1']
    #allocation4 [shape = 's32[1]{0}', space=sflag, size = 0x4, scoped, tag = 'scoped memory for tpu_custom_call.1']
    #allocation5 [shape = 'u8[16384]{0}', space=vmem, size = 0x4000, scoped, tag = 'input window, operand 1, single buffered']
    #allocation6 [shape = 's32[1]{0}', space=sflag, size = 0x4, scoped, tag = 'scoped memory for tpu_custom_call.1']
    #allocation7 [shape = 'u8[8192]{0}', space=vmem, size = 0x2000, scoped, tag = 'output window, operand 0, single buffered']
    %8 = vsyncpa [#allocation3], 0
    %9 = vsyncpa [#allocation6], 0
    %10 = vsyncpa [#allocation4], 0
    // Predicated region
    $region2: #{tpu_custom_call.1} parent=1 // pred_check
      _
    $region3: #{tpu_custom_call.1} parent=1 // pred_check_branch
      %12 = sbr.rel (0) target = $region5
    $region4: #{tpu_custom_call.1} parent=1 // pred_region
      %s14 = ssub.s32 256, 256
      %15 = vsyncadd [#allocation3], %s14
      %s16 = sshll.u32 [#allocation2], 4
      %s17 = int_to_ptr.vmem [resolvable:$true] %s16
      %22 = dma.hbm_to_vmem [thread:$0]  %s0, 256, %s17, [#allocation3], 128, 128, 8
    $region5: #{tpu_custom_call.1} parent=1 // pred_fallthru
      _
    // Predicated region
    $region6: #{tpu_custom_call.1} parent=1 // pred_check
      _
    $region7: #{tpu_custom_call.1} parent=1 // pred_check_branch
      %24 = sbr.rel (0) target = $region9
    $region8: #{tpu_custom_call.1} parent=1 // pred_region
      %s26 = ssub.s32 512, 512
      %27 = vsyncadd [#allocation6], %s26
      %s28 = sshll.u32 [#allocation5], 4
      %s29 = int_to_ptr.vmem [resolvable:$true] %s28
      %34 = dma.hbm_to_vmem [thread:$0]  %s1, 512, %s29, [#allocation6], 128, 128, 8
    $region9: #{tpu_custom_call.1} parent=1 // pred_fallthru
      _
    // Predicated region
    $region10: #{tpu_custom_call.1} parent=1 // pred_check
      _
    $region11: #{tpu_custom_call.1} parent=1 // pred_check_branch
      %36 = sbr.rel (0) target = $region13
    $region12: #{tpu_custom_call.1} parent=1 // pred_region
      _
    $region13: #{tpu_custom_call.1} parent=1 // pred_fallthru
      _
    // Predicated region
    $region14: #{tpu_custom_call.1} parent=1 // pred_check
      _
    $region15: #{tpu_custom_call.1} parent=1 // pred_check_branch
      %38 = sbr.rel (0) target = $region17
    $region16: #{tpu_custom_call.1} parent=1 // pred_region
      %39 = dma.done [#allocation3], 256
    $region17: #{tpu_custom_call.1} parent=1 // pred_fallthru
      _
    // Predicated region
    $region18: #{tpu_custom_call.1} parent=1 // pred_check
      _
    $region19: #{tpu_custom_call.1} parent=1 // pred_check_branch
      %41 = sbr.rel (0) target = $region21
    $region20: #{tpu_custom_call.1} parent=1 // pred_region
      %42 = dma.done [#allocation6], 512
    $region21: #{tpu_custom_call.1} parent=1 // pred_fallthru
      _
    %v44 = vld [vmem:[#allocation5] sm:$0xff]
    %v45 = vld [vmem:[#allocation5 + $0x8] sm:$0xff]
    %v46 = vld [vmem:[#allocation5 + $0x10] sm:$0xff]
    %v47 = vld [vmem:[#allocation5 + $0x18] sm:$0xff]
    $region22: #{tpu_custom_call.1} parent=1
      #allocation8 [shape = 'u8[4096]{0}', space=vmem, size = 0x1000, scoped, tag = 'scoped memory for tpu_custom_call.1']
      %48 = vst [vmem:[#allocation8] sm:$0xff] %v44
      %v49 = vld [vmem:[#allocation8] sm:$0x3]
      %v50 = vunpack.c.0.f8e4m3b11 %v49
      %v51 = vunpack.c.1.f8e4m3b11 %v49
      %v52 = vunpack.c.2.f8e4m3b11 %v49
      %v53 = vunpack.c.3.f8e4m3b11 %v49
      %v54 = vand.u32 2147483647, %v50
      %vm55 = vcmp.gt.f32.partialorder %v54, 29.0
      %vm56 = vcmp.ne.f32.partialorder %v50, %v50
      %v57 = vmul.f32 %v50, 16.0
      %v58 = vsel %vm56, -0.0, %v57
      %v59 = vsel %vm55, nan, %v58
      %v60 = vand.u32 2147483647, %v51
      %vm61 = vcmp.gt.f32.partialorder %v60, 29.0
      %vm62 = vcmp.ne.f32.partialorder %v51, %v51
      %v63 = vmul.f32 %v51, 16.0
      %v64 = vsel %vm62, -0.0, %v63
      %v65 = vsel %vm61, nan, %v64
      %v66 = vand.u32 2147483647, %v52
      %vm67 = vcmp.gt.f32.partialorder %v66, 29.0
      %vm68 = vcmp.ne.f32.partialorder %v52, %v52
      %v69 = vmul.f32 %v52, 16.0
      %v70 = vsel %vm68, -0.0, %v69
      %v71 = vsel %vm67, nan, %v70
      %v72 = vand.u32 2147483647, %v53
      %vm73 = vcmp.gt.f32.partialorder %v72, 29.0
      %vm74 = vcmp.ne.f32.partialorder %v53, %v53
      %v75 = vmul.f32 %v53, 16.0
      %v76 = vsel %vm74, -0.0, %v75
      %v77 = vsel %vm73, nan, %v76
    $region23: #{tpu_custom_call.1} parent=1
      #allocation9 [shape = 'u8[4096]{0}', space=vmem, size = 0x1000, scoped, tag = 'scoped memory for tpu_custom_call.1']
      %78 = vst [vmem:[#allocation9] sm:$0xff] %v44
      %s79 = scalar_lea.vmem [#allocation9], 2
      %v80 = vld [vmem:[%s79] sm:$0x3]
      %v81 = vunpack.c.0.f8e4m3b11 %v80
      %v82 = vunpack.c.1.f8e4m3b11 %v80
      %v83 = vunpack.c.2.f8e4m3b11 %v80
      %v84 = vunpack.c.3.f8e4m3b11 %v80
      %v85 = vand.u32 2147483647, %v81
      %vm86 = vcmp.gt.f32.partialorder %v85, 29.0
      %vm87 = vcmp.ne.f32.partialorder %v81, %v81
      %v88 = vmul.f32 %v81, 16.0
      %v89 = vsel %vm87, -0.0, %v88
      %v90 = vsel %vm86, nan, %v89
      %v91 = vand.u32 2147483647, %v82
      %vm92 = vcmp.gt.f32.partialorder %v91, 29.0
      %vm93 = vcmp.ne.f32.partialorder %v82, %v82
      %v94 = vmul.f32 %v82, 16.0
      %v95 = vsel %vm93, -0.0, %v94
      %v96 = vsel %vm92, nan, %v95
      %v97 = vand.u32 2147483647, %v83
      %vm98 = vcmp.gt.f32.partialorder %v97, 29.0
      %vm99 = vcmp.ne.f32.partialorder %v83, %v83
      %v100 = vmul.f32 %v83, 16.0
      %v101 = vsel %vm99, -0.0, %v100
      %v102 = vsel %vm98, nan, %v101
      %v103 = vand.u32 2147483647, %v84
      %vm104 = vcmp.gt.f32.partialorder %v103, 29.0
      %vm105 = vcmp.ne.f32.partialorder %v84, %v84
      %v106 = vmul.f32 %v84, 16.0
      %v107 = vsel %vm105, -0.0, %v106
      %v108 = vsel %vm104, nan, %v107
    $region24: #{tpu_custom_call.1} parent=1
      #allocation10 [shape = 'u8[4096]{0}', space=vmem, size = 0x1000, scoped, tag = 'scoped memory for tpu_custom_call.1']
      %109 = vst [vmem:[#allocation10] sm:$0xff] %v44
      %s110 = scalar_lea.vmem [#allocation10], 4
      %v111 = vld [vmem:[%s110] sm:$0x3]
      %v112 = vunpack.c.0.f8e4m3b11 %v111
      %v113 = vunpack.c.1.f8e4m3b11 %v111
      %v114 = vunpack.c.2.f8e4m3b11 %v111
      %v115 = vunpack.c.3.f8e4m3b11 %v111
      %v116 = vand.u32 2147483647, %v112
      %vm117 = vcmp.gt.f32.partialorder %v116, 29.0
      %vm118 = vcmp.ne.f32.partialorder %v112, %v112
      %v119 = vmul.f32 %v112, 16.0
      %v120 = vsel %vm118, -0.0, %v119
      %v121 = vsel %vm117, nan, %v120
      %v122 = vand.u32 2147483647, %v113
      %vm123 = vcmp.gt.f32.partialorder %v122, 29.0
      %vm124 = vcmp.ne.f32.partialorder %v113, %v113
      %v125 = vmul.f32 %v113, 16.0
      %v126 = vsel %vm124, -0.0, %v125
      %v127 = vsel %vm123, nan, %v126
      %v128 = vand.u32 2147483647, %v114
      %vm129 = vcmp.gt.f32.partialorder %v128, 29.0
      %vm130 = vcmp.ne.f32.partialorder %v114, %v114
      %v131 = vmul.f32 %v114, 16.0
      %v132 = vsel %vm130, -0.0, %v131
      %v133 = vsel %vm129, nan, %v132
      %v134 = vand.u32 2147483647, %v115
      %vm135 = vcmp.gt.f32.partialorder %v134, 29.0
      %vm136 = vcmp.ne.f32.partialorder %v115, %v115
      %v137 = vmul.f32 %v115, 16.0
      %v138 = vsel %vm136, -0.0, %v137
      %v139 = vsel %vm135, nan, %v138
    $region25: #{tpu_custom_call.1} parent=1
      #allocation11 [shape = 'u8[4096]{0}', space=vmem, size = 0x1000, scoped, tag = 'scoped memory for tpu_custom_call.1']
      %140 = vst [vmem:[#allocation11] sm:$0xff] %v44
      %s141 = scalar_lea.vmem [#allocation11], 6
      %v142 = vld [vmem:[%s141] sm:$0x3]
      %v143 = vunpack.c.0.f8e4m3b11 %v142
      %v144 = vunpack.c.1.f8e4m3b11 %v142
      %v145 = vunpack.c.2.f8e4m3b11 %v142
      %v146 = vunpack.c.3.f8e4m3b11 %v142
      %v147 = vand.u32 2147483647, %v143
      %vm148 = vcmp.gt.f32.partialorder %v147, 29.0
      %vm149 = vcmp.ne.f32.partialorder %v143, %v143
      %v150 = vmul.f32 %v143, 16.0
      %v151 = vsel %vm149, -0.0, %v150
      %v152 = vsel %vm148, nan, %v151
      %v153 = vand.u32 2147483647, %v144
      %vm154 = vcmp.gt.f32.partialorder %v153, 29.0
      %vm155 = vcmp.ne.f32.partialorder %v144, %v144
      %v156 = vmul.f32 %v144, 16.0
      %v157 = vsel %vm155, -0.0, %v156
      %v158 = vsel %vm154, nan, %v157
      %v159 = vand.u32 2147483647, %v145
      %vm160 = vcmp.gt.f32.partialorder %v159, 29.0
      %vm161 = vcmp.ne.f32.partialorder %v145, %v145
      %v162 = vmul.f32 %v145, 16.0
      %v163 = vsel %vm161, -0.0, %v162
      %v164 = vsel %vm160, nan, %v163
      %v165 = vand.u32 2147483647, %v146
      %vm166 = vcmp.gt.f32.partialorder %v165, 29.0
      %vm167 = vcmp.ne.f32.partialorder %v146, %v146
      %v168 = vmul.f32 %v146, 16.0
      %v169 = vsel %vm167, -0.0, %v168
      %v170 = vsel %vm166, nan, %v169
    $region26: #{tpu_custom_call.1} parent=1
      #allocation12 [shape = 'u8[4096]{0}', space=vmem, size = 0x1000, scoped, tag = 'scoped memory for tpu_custom_call.1']
      %171 = vst [vmem:[#allocation12] sm:$0xff] %v45
      %v172 = vld [vmem:[#allocation12] sm:$0x3]
      %v173 = vunpack.c.0.f8e4m3b11 %v172
      %v174 = vunpack.c.1.f8e4m3b11 %v172
      %v175 = vunpack.c.2.f8e4m3b11 %v172
      %v176 = vunpack.c.3.f8e4m3b11 %v172
      %v177 = vand.u32 2147483647, %v173
      %vm178 = vcmp.gt.f32.partialorder %v177, 29.0
      %vm179 = vcmp.ne.f32.partialorder %v173, %v173
      %v180 = vmul.f32 %v173, 16.0
      %v181 = vsel %vm179, -0.0, %v180
      %v182 = vsel %vm178, nan, %v181
      %v183 = vand.u32 2147483647, %v174
      %vm184 = vcmp.gt.f32.partialorder %v183, 29.0
      %vm185 = vcmp.ne.f32.partialorder %v174, %v174
      %v186 = vmul.f32 %v174, 16.0
      %v187 = vsel %vm185, -0.0, %v186
      %v188 = vsel %vm184, nan, %v187
      %v189 = vand.u32 2147483647, %v175
      %vm190 = vcmp.gt.f32.partialorder %v189, 29.0
      %vm191 = vcmp.ne.f32.partialorder %v175, %v175
      %v192 = vmul.f32 %v175, 16.0
      %v193 = vsel %vm191, -0.0, %v192
      %v194 = vsel %vm190, nan, %v193
      %v195 = vand.u32 2147483647, %v176
      %vm196 = vcmp.gt.f32.partialorder %v195, 29.0
      %vm197 = vcmp.ne.f32.partialorder %v176, %v176
      %v198 = vmul.f32 %v176, 16.0
      %v199 = vsel %vm197, -0.0, %v198
      %v200 = vsel %vm196, nan, %v199
    $region27: #{tpu_custom_call.1} parent=1
      #allocation13 [shape = 'u8[4096]{0}', space=vmem, size = 0x1000, scoped, tag = 'scoped memory for tpu_custom_call.1']
      %201 = vst [vmem:[#allocation13] sm:$0xff] %v45
      %s202 = scalar_lea.vmem [#allocation13], 2
      %v203 = vld [vmem:[%s202] sm:$0x3]
      %v204 = vunpack.c.0.f8e4m3b11 %v203
      %v205 = vunpack.c.1.f8e4m3b11 %v203
      %v206 = vunpack.c.2.f8e4m3b11 %v203
      %v207 = vunpack.c.3.f8e4m3b11 %v203
      %v208 = vand.u32 2147483647, %v204
      %vm209 = vcmp.gt.f32.partialorder %v208, 29.0
      %vm210 = vcmp.ne.f32.partialorder %v204, %v204
      %v211 = vmul.f32 %v204, 16.0
      %v212 = vsel %vm210, -0.0, %v211
      %v213 = vsel %vm209, nan, %v212
      %v214 = vand.u32 2147483647, %v205
      %vm215 = vcmp.gt.f32.partialorder %v214, 29.0
      %vm216 = vcmp.ne.f32.partialorder %v205, %v205
      %v217 = vmul.f32 %v205, 16.0
      %v218 = vsel %vm216, -0.0, %v217
      %v219 = vsel %vm215, nan, %v218
      %v220 = vand.u32 2147483647, %v206
      %vm221 = vcmp.gt.f32.partialorder %v220, 29.0
      %vm222 = vcmp.ne.f32.partialorder %v206, %v206
      %v223 = vmul.f32 %v206, 16.0
      %v224 = vsel %vm222, -0.0, %v223
      %v225 = vsel %vm221, nan, %v224
      %v226 = vand.u32 2147483647, %v207
      %vm227 = vcmp.gt.f32.partialorder %v226, 29.0
      %vm228 = vcmp.ne.f32.partialorder %v207, %v207
      %v229 = vmul.f32 %v207, 16.0
      %v230 = vsel %vm228, -0.0, %v229
      %v231 = vsel %vm227, nan, %v230
    $region28: #{tpu_custom_call.1} parent=1
      #allocation14 [shape = 'u8[4096]{0}', space=vmem, size = 0x1000, scoped, tag = 'scoped memory for tpu_custom_call.1']
      %232 = vst [vmem:[#allocation14] sm:$0xff] %v45
      %s233 = scalar_lea.vmem [#allocation14], 4
      %v234 = vld [vmem:[%s233] sm:$0x3]
      %v235 = vunpack.c.0.f8e4m3b11 %v234
      %v236 = vunpack.c.1.f8e4m3b11 %v234
      %v237 = vunpack.c.2.f8e4m3b11 %v234
      %v238 = vunpack.c.3.f8e4m3b11 %v234
      %v239 = vand.u32 2147483647, %v235
      %vm240 = vcmp.gt.f32.partialorder %v239, 29.0
      %vm241 = vcmp.ne.f32.partialorder %v235, %v235
      %v242 = vmul.f32 %v235, 16.0
      %v243 = vsel %vm241, -0.0, %v242
      %v244 = vsel %vm240, nan, %v243
      %v245 = vand.u32 2147483647, %v236
      %vm246 = vcmp.gt.f32.partialorder %v245, 29.0
      %vm247 = vcmp.ne.f32.partialorder %v236, %v236
      %v248 = vmul.f32 %v236, 16.0
      %v249 = vsel %vm247, -0.0, %v248
      %v250 = vsel %vm246, nan, %v249
      %v251 = vand.u32 2147483647, %v237
      %vm252 = vcmp.gt.f32.partialorder %v251, 29.0
      %vm253 = vcmp.ne.f32.partialorder %v237, %v237
      %v254 = vmul.f32 %v237, 16.0
      %v255 = vsel %vm253, -0.0, %v254
      %v256 = vsel %vm252, nan, %v255
      %v257 = vand.u32 2147483647, %v238
      %vm258 = vcmp.gt.f32.partialorder %v257, 29.0
      %vm259 = vcmp.ne.f32.partialorder %v238, %v238
      %v260 = vmul.f32 %v238, 16.0
      %v261 = vsel %vm259, -0.0, %v260
      %v262 = vsel %vm258, nan, %v261
    $region29: #{tpu_custom_call.1} parent=1
      #allocation15 [shape = 'u8[4096]{0}', space=vmem, size = 0x1000, scoped, tag = 'scoped memory for tpu_custom_call.1']
      %263 = vst [vmem:[#allocation15] sm:$0xff] %v45
      %s264 = scalar_lea.vmem [#allocation15], 6
      %v265 = vld [vmem:[%s264] sm:$0x3]
      %v266 = vunpack.c.0.f8e4m3b11 %v265
      %v267 = vunpack.c.1.f8e4m3b11 %v265
      %v268 = vunpack.c.2.f8e4m3b11 %v265
      %v269 = vunpack.c.3.f8e4m3b11 %v265
      %v270 = vand.u32 2147483647, %v266
      %vm271 = vcmp.gt.f32.partialorder %v270, 29.0
      %vm272 = vcmp.ne.f32.partialorder %v266, %v266
      %v273 = vmul.f32 %v266, 16.0
      %v274 = vsel %vm272, -0.0, %v273
      %v275 = vsel %vm271, nan, %v274
      %v276 = vand.u32 2147483647, %v267
      %vm277 = vcmp.gt.f32.partialorder %v276, 29.0
      %vm278 = vcmp.ne.f32.partialorder %v267, %v267
      %v279 = vmul.f32 %v267, 16.0
      %v280 = vsel %vm278, -0.0, %v279
      %v281 = vsel %vm277, nan, %v280
      %v282 = vand.u32 2147483647, %v268
      %vm283 = vcmp.gt.f32.partialorder %v282, 29.0
      %vm284 = vcmp.ne.f32.partialorder %v268, %v268
      %v285 = vmul.f32 %v268, 16.0
      %v286 = vsel %vm284, -0.0, %v285
      %v287 = vsel %vm283, nan, %v286
      %v288 = vand.u32 2147483647, %v269
      %vm289 = vcmp.gt.f32.partialorder %v288, 29.0
      %vm290 = vcmp.ne.f32.partialorder %v269, %v269
      %v291 = vmul.f32 %v269, 16.0
      %v292 = vsel %vm290, -0.0, %v291
      %v293 = vsel %vm289, nan, %v292
    $region30: #{tpu_custom_call.1} parent=1
      #allocation16 [shape = 'u8[4096]{0}', space=vmem, size = 0x1000, scoped, tag = 'scoped memory for tpu_custom_call.1']
      %294 = vst [vmem:[#allocation16] sm:$0xff] %v46
      %v295 = vld [vmem:[#allocation16] sm:$0x3]
      %v296 = vunpack.c.0.f8e4m3b11 %v295
      %v297 = vunpack.c.1.f8e4m3b11 %v295
      %v298 = vunpack.c.2.f8e4m3b11 %v295
      %v299 = vunpack.c.3.f8e4m3b11 %v295
      %v300 = vand.u32 2147483647, %v296
      %vm301 = vcmp.gt.f32.partialorder %v300, 29.0
      %vm302 = vcmp.ne.f32.partialorder %v296, %v296
      %v303 = vmul.f32 %v296, 16.0
      %v304 = vsel %vm302, -0.0, %v303
      %v305 = vsel %vm301, nan, %v304
      %v306 = vand.u32 2147483647, %v297
      %vm307 = vcmp.gt.f32.partialorder %v306, 29.0
      %vm308 = vcmp.ne.f32.partialorder %v297, %v297
      %v309 = vmul.f32 %v297, 16.0
      %v310 = vsel %vm308, -0.0, %v309
      %v311 = vsel %vm307, nan, %v310
      %v312 = vand.u32 2147483647, %v298
      %vm313 = vcmp.gt.f32.partialorder %v312, 29.0
      %vm314 = vcmp.ne.f32.partialorder %v298, %v298
      %v315 = vmul.f32 %v298, 16.0
      %v316 = vsel %vm314, -0.0, %v315
      %v317 = vsel %vm313, nan, %v316
      %v318 = vand.u32 2147483647, %v299
      %vm319 = vcmp.gt.f32.partialorder %v318, 29.0
      %vm320 = vcmp.ne.f32.partialorder %v299, %v299
      %v321 = vmul.f32 %v299, 16.0
      %v322 = vsel %vm320, -0.0, %v321
      %v323 = vsel %vm319, nan, %v322
    $region31: #{tpu_custom_call.1} parent=1
      #allocation17 [shape = 'u8[4096]{0}', space=vmem, size = 0x1000, scoped, tag = 'scoped memory for tpu_custom_call.1']
      %324 = vst [vmem:[#allocation17] sm:$0xff] %v46
      %s325 = scalar_lea.vmem [#allocation17], 2
      %v326 = vld [vmem:[%s325] sm:$0x3]
      %v327 = vunpack.c.0.f8e4m3b11 %v326
      %v328 = vunpack.c.1.f8e4m3b11 %v326
      %v329 = vunpack.c.2.f8e4m3b11 %v326
      %v330 = vunpack.c.3.f8e4m3b11 %v326
      %v331 = vand.u32 2147483647, %v327
      %vm332 = vcmp.gt.f32.partialorder %v331, 29.0
      %vm333 = vcmp.ne.f32.partialorder %v327, %v327
      %v334 = vmul.f32 %v327, 16.0
      %v335 = vsel %vm333, -0.0, %v334
      %v336 = vsel %vm332, nan, %v335
      %v337 = vand.u32 2147483647, %v328
      %vm338 = vcmp.gt.f32.partialorder %v337, 29.0
      %vm339 = vcmp.ne.f32.partialorder %v328, %v328
      %v340 = vmul.f32 %v328, 16.0
      %v341 = vsel %vm339, -0.0, %v340
      %v342 = vsel %vm338, nan, %v341
      %v343 = vand.u32 2147483647, %v329
      %vm344 = vcmp.gt.f32.partialorder %v343, 29.0
      %vm345 = vcmp.ne.f32.partialorder %v329, %v329
      %v346 = vmul.f32 %v329, 16.0
      %v347 = vsel %vm345, -0.0, %v346
      %v348 = vsel %vm344, nan, %v347
      %v349 = vand.u32 2147483647, %v330
      %vm350 = vcmp.gt.f32.partialorder %v349, 29.0
      %vm351 = vcmp.ne.f32.partialorder %v330, %v330
      %v352 = vmul.f32 %v330, 16.0
      %v353 = vsel %vm351, -0.0, %v352
      %v354 = vsel %vm350, nan, %v353
    $region32: #{tpu_custom_call.1} parent=1
      #allocation18 [shape = 'u8[4096]{0}', space=vmem, size = 0x1000, scoped, tag = 'scoped memory for tpu_custom_call.1']
      %355 = vst [vmem:[#allocation18] sm:$0xff] %v46
      %s356 = scalar_lea.vmem [#allocation18], 4
      %v357 = vld [vmem:[%s356] sm:$0x3]
      %v358 = vunpack.c.0.f8e4m3b11 %v357
      %v359 = vunpack.c.1.f8e4m3b11 %v357
      %v360 = vunpack.c.2.f8e4m3b11 %v357
      %v361 = vunpack.c.3.f8e4m3b11 %v357
      %v362 = vand.u32 2147483647, %v358
      %vm363 = vcmp.gt.f32.partialorder %v362, 29.0
      %vm364 = vcmp.ne.f32.partialorder %v358, %v358
      %v365 = vmul.f32 %v358, 16.0
      %v366 = vsel %vm364, -0.0, %v365
      %v367 = vsel %vm363, nan, %v366
      %v368 = vand.u32 2147483647, %v359
      %vm369 = vcmp.gt.f32.partialorder %v368, 29.0
      %vm370 = vcmp.ne.f32.partialorder %v359, %v359
      %v371 = vmul.f32 %v359, 16.0
      %v372 = vsel %vm370, -0.0, %v371
      %v373 = vsel %vm369, nan, %v372
      %v374 = vand.u32 2147483647, %v360
      %vm375 = vcmp.gt.f32.partialorder %v374, 29.0
      %vm376 = vcmp.ne.f32.partialorder %v360, %v360
      %v377 = vmul.f32 %v360, 16.0
      %v378 = vsel %vm376, -0.0, %v377
      %v379 = vsel %vm375, nan, %v378
      %v380 = vand.u32 2147483647, %v361
      %vm381 = vcmp.gt.f32.partialorder %v380, 29.0
      %vm382 = vcmp.ne.f32.partialorder %v361, %v361
      %v383 = vmul.f32 %v361, 16.0
      %v384 = vsel %vm382, -0.0, %v383
      %v385 = vsel %vm381, nan, %v384
    $region33: #{tpu_custom_call.1} parent=1
      #allocation19 [shape = 'u8[4096]{0}', space=vmem, size = 0x1000, scoped, tag = 'scoped memory for tpu_custom_call.1']
      %386 = vst [vmem:[#allocation19] sm:$0xff] %v46
      %s387 = scalar_lea.vmem [#allocation19], 6
      %v388 = vld [vmem:[%s387] sm:$0x3]
      %v389 = vunpack.c.0.f8e4m3b11 %v388
      %v390 = vunpack.c.1.f8e4m3b11 %v388
      %v391 = vunpack.c.2.f8e4m3b11 %v388
      %v392 = vunpack.c.3.f8e4m3b11 %v388
      %v393 = vand.u32 2147483647, %v389
      %vm394 = vcmp.gt.f32.partialorder %v393, 29.0
      %vm395 = vcmp.ne.f32.partialorder %v389, %v389
      %v396 = vmul.f32 %v389, 16.0
      %v397 = vsel %vm395, -0.0, %v396
      %v398 = vsel %vm394, nan, %v397
      %v399 = vand.u32 2147483647, %v390
      %vm400 = vcmp.gt.f32.partialorder %v399, 29.0
      %vm401 = vcmp.ne.f32.partialorder %v390, %v390
      %v402 = vmul.f32 %v390, 16.0
      %v403 = vsel %vm401, -0.0, %v402
      %v404 = vsel %vm400, nan, %v403
      %v405 = vand.u32 2147483647, %v391
      %vm406 = vcmp.gt.f32.partialorder %v405, 29.0
      %vm407 = vcmp.ne.f32.partialorder %v391, %v391
      %v408 = vmul.f32 %v391, 16.0
      %v409 = vsel %vm407, -0.0, %v408
      %v410 = vsel %vm406, nan, %v409
      %v411 = vand.u32 2147483647, %v392
      %vm412 = vcmp.gt.f32.partialorder %v411, 29.0
      %vm413 = vcmp.ne.f32.partialorder %v392, %v392
      %v414 = vmul.f32 %v392, 16.0
      %v415 = vsel %vm413, -0.0, %v414
      %v416 = vsel %vm412, nan, %v415
    $region34: #{tpu_custom_call.1} parent=1
      #allocation20 [shape = 'u8[4096]{0}', space=vmem, size = 0x1000, scoped, tag = 'scoped memory for tpu_custom_call.1']
      %417 = vst [vmem:[#allocation20] sm:$0xff] %v47
      %v418 = vld [vmem:[#allocation20] sm:$0x3]
      %v419 = vunpack.c.0.f8e4m3b11 %v418
      %v420 = vunpack.c.1.f8e4m3b11 %v418
      %v421 = vunpack.c.2.f8e4m3b11 %v418
      %v422 = vunpack.c.3.f8e4m3b11 %v418
      %v423 = vand.u32 2147483647, %v419
      %vm424 = vcmp.gt.f32.partialorder %v423, 29.0
      %vm425 = vcmp.ne.f32.partialorder %v419, %v419
      %v426 = vmul.f32 %v419, 16.0
      %v427 = vsel %vm425, -0.0, %v426
      %v428 = vsel %vm424, nan, %v427
      %v429 = vand.u32 2147483647, %v420
      %vm430 = vcmp.gt.f32.partialorder %v429, 29.0
      %vm431 = vcmp.ne.f32.partialorder %v420, %v420
      %v432 = vmul.f32 %v420, 16.0
      %v433 = vsel %vm431, -0.0, %v432
      %v434 = vsel %vm430, nan, %v433
      %v435 = vand.u32 2147483647, %v421
      %vm436 = vcmp.gt.f32.partialorder %v435, 29.0
      %vm437 = vcmp.ne.f32.partialorder %v421, %v421
      %v438 = vmul.f32 %v421, 16.0
      %v439 = vsel %vm437, -0.0, %v438
      %v440 = vsel %vm436, nan, %v439
      %v441 = vand.u32 2147483647, %v422
      %vm442 = vcmp.gt.f32.partialorder %v441, 29.0
      %vm443 = vcmp.ne.f32.partialorder %v422, %v422
      %v444 = vmul.f32 %v422, 16.0
      %v445 = vsel %vm443, -0.0, %v444
      %v446 = vsel %vm442, nan, %v445
    $region35: #{tpu_custom_call.1} parent=1
      #allocation21 [shape = 'u8[4096]{0}', space=vmem, size = 0x1000, scoped, tag = 'scoped memory for tpu_custom_call.1']
      %447 = vst [vmem:[#allocation21] sm:$0xff] %v47
      %s448 = scalar_lea.vmem [#allocation21], 2
      %v449 = vld [vmem:[%s448] sm:$0x3]
      %v450 = vunpack.c.0.f8e4m3b11 %v449
      %v451 = vunpack.c.1.f8e4m3b11 %v449
      %v452 = vunpack.c.2.f8e4m3b11 %v449
      %v453 = vunpack.c.3.f8e4m3b11 %v449
      %v454 = vand.u32 2147483647, %v450
      %vm455 = vcmp.gt.f32.partialorder %v454, 29.0
      %vm456 = vcmp.ne.f32.partialorder %v450, %v450
      %v457 = vmul.f32 %v450, 16.0
      %v458 = vsel %vm456, -0.0, %v457
      %v459 = vsel %vm455, nan, %v458
      %v460 = vand.u32 2147483647, %v451
      %vm461 = vcmp.gt.f32.partialorder %v460, 29.0
      %vm462 = vcmp.ne.f32.partialorder %v451, %v451
      %v463 = vmul.f32 %v451, 16.0
      %v464 = vsel %vm462, -0.0, %v463
      %v465 = vsel %vm461, nan, %v464
      %v466 = vand.u32 2147483647, %v452
      %vm467 = vcmp.gt.f32.partialorder %v466, 29.0
      %vm468 = vcmp.ne.f32.partialorder %v452, %v452
      %v469 = vmul.f32 %v452, 16.0
      %v470 = vsel %vm468, -0.0, %v469
      %v471 = vsel %vm467, nan, %v470
      %v472 = vand.u32 2147483647, %v453
      %vm473 = vcmp.gt.f32.partialorder %v472, 29.0
      %vm474 = vcmp.ne.f32.partialorder %v453, %v453
      %v475 = vmul.f32 %v453, 16.0
      %v476 = vsel %vm474, -0.0, %v475
      %v477 = vsel %vm473, nan, %v476
    $region36: #{tpu_custom_call.1} parent=1
      #allocation22 [shape = 'u8[4096]{0}', space=vmem, size = 0x1000, scoped, tag = 'scoped memory for tpu_custom_call.1']
      %478 = vst [vmem:[#allocation22] sm:$0xff] %v47
      %s479 = scalar_lea.vmem [#allocation22], 4
      %v480 = vld [vmem:[%s479] sm:$0x3]
      %v481 = vunpack.c.0.f8e4m3b11 %v480
      %v482 = vunpack.c.1.f8e4m3b11 %v480
      %v483 = vunpack.c.2.f8e4m3b11 %v480
      %v484 = vunpack.c.3.f8e4m3b11 %v480
      %v485 = vand.u32 2147483647, %v481
      %vm486 = vcmp.gt.f32.partialorder %v485, 29.0
      %vm487 = vcmp.ne.f32.partialorder %v481, %v481
      %v488 = vmul.f32 %v481, 16.0
      %v489 = vsel %vm487, -0.0, %v488
      %v490 = vsel %vm486, nan, %v489
      %v491 = vand.u32 2147483647, %v482
      %vm492 = vcmp.gt.f32.partialorder %v491, 29.0
      %vm493 = vcmp.ne.f32.partialorder %v482, %v482
      %v494 = vmul.f32 %v482, 16.0
      %v495 = vsel %vm493, -0.0, %v494
      %v496 = vsel %vm492, nan, %v495
      %v497 = vand.u32 2147483647, %v483
      %vm498 = vcmp.gt.f32.partialorder %v497, 29.0
      %vm499 = vcmp.ne.f32.partialorder %v483, %v483
      %v500 = vmul.f32 %v483, 16.0
      %v501 = vsel %vm499, -0.0, %v500
      %v502 = vsel %vm498, nan, %v501
      %v503 = vand.u32 2147483647, %v484
      %vm504 = vcmp.gt.f32.partialorder %v503, 29.0
      %vm505 = vcmp.ne.f32.partialorder %v484, %v484
      %v506 = vmul.f32 %v484, 16.0
      %v507 = vsel %vm505, -0.0, %v506
      %v508 = vsel %vm504, nan, %v507
    $region37: #{tpu_custom_call.1} parent=1
      #allocation23 [shape = 'u8[4096]{0}', space=vmem, size = 0x1000, scoped, tag = 'scoped memory for tpu_custom_call.1']
      %509 = vst [vmem:[#allocation23] sm:$0xff] %v47
      %s510 = scalar_lea.vmem [#allocation23], 6
      %v511 = vld [vmem:[%s510] sm:$0x3]
      %v512 = vunpack.c.0.f8e4m3b11 %v511
      %v513 = vunpack.c.1.f8e4m3b11 %v511
      %v514 = vunpack.c.2.f8e4m3b11 %v511
      %v515 = vunpack.c.3.f8e4m3b11 %v511
      %v516 = vand.u32 2147483647, %v512
      %vm517 = vcmp.gt.f32.partialorder %v516, 29.0
      %vm518 = vcmp.ne.f32.partialorder %v512, %v512
      %v519 = vmul.f32 %v512, 16.0
      %v520 = vsel %vm518, -0.0, %v519
      %v521 = vsel %vm517, nan, %v520
      %v522 = vand.u32 2147483647, %v513
      %vm523 = vcmp.gt.f32.partialorder %v522, 29.0
      %vm524 = vcmp.ne.f32.partialorder %v513, %v513
      %v525 = vmul.f32 %v513, 16.0
      %v526 = vsel %vm524, -0.0, %v525
      %v527 = vsel %vm523, nan, %v526
      %v528 = vand.u32 2147483647, %v514
      %vm529 = vcmp.gt.f32.partialorder %v528, 29.0
      %vm530 = vcmp.ne.f32.partialorder %v514, %v514
      %v531 = vmul.f32 %v514, 16.0
      %v532 = vsel %vm530, -0.0, %v531
      %v533 = vsel %vm529, nan, %v532
      %v534 = vand.u32 2147483647, %v515
      %vm535 = vcmp.gt.f32.partialorder %v534, 29.0
      %vm536 = vcmp.ne.f32.partialorder %v515, %v515
      %v537 = vmul.f32 %v515, 16.0
      %v538 = vsel %vm536, -0.0, %v537
      %v539 = vsel %vm535, nan, %v538
    %v540 = vpack.c.bf16 %v90, %v59
    %v541 = vpack.c.bf16 %v152, %v121
    %v542 = vpack.c.bf16 %v213, %v182
    %v543 = vpack.c.bf16 %v275, %v244
    %v544 = vpack.c.bf16 %v336, %v305
    %v545 = vpack.c.bf16 %v398, %v367
    %v546 = vpack.c.bf16 %v459, %v428
    %v547 = vpack.c.bf16 %v521, %v490
    %v548 = vld [vmem:[#allocation2] sm:$0xff]
    %v549 = vld [vmem:[#allocation2 + $0x8] sm:$0xff]
    %v550 = vpack.c.bf16 %v549, %v548
    %551 = vmatprep.subr.bf16.mxu0 0
    %552 = vmatpush1.bf16.msra.mxu0 %v547
    %553 = vmatprep.subr.bf16.mxu0 0
    %554 = vmatpush1.bf16.msra.mxu0 %v546
    %555 = vmatprep.subr.bf16.mxu0 0
    %556 = vmatpush1.bf16.msra.mxu0 %v545
    %557 = vmatprep.subr.bf16.mxu0 0
    %558 = vmatpush1.bf16.msra.mxu0 %v544
    %559 = vmatprep.subr.bf16.mxu0 0
    %560 = vmatpush1.bf16.msra.mxu0 %v543
    %561 = vmatprep.subr.bf16.mxu0 0
    %562 = vmatpush1.bf16.msra.mxu0 %v542
    %563 = vmatprep.subr.bf16.mxu0 0
    %564 = vmatpush1.bf16.msra.mxu0 %v541
    %565 = vmatprep.subr.bf16.mxu0 0
    %566 = vmatpush1.bf16.msra.mxu0 %v540
    %567 = vmatprep.subr.bf16.mxu0 0
    %568 = vmatpush2.bf16.msra.mxu0 0
    %569 = vmatprep.subr.bf16.mxu0 0
    %570 = vmatpush2.bf16.msra.mxu0 0
    %571 = vmatprep.subr.bf16.mxu0 0
    %572 = vmatpush2.bf16.msra.mxu0 0
    %573 = vmatprep.subr.bf16.mxu0 0
    %574 = vmatpush2.bf16.msra.mxu0 0
    %575 = vmatprep.subr.bf16.mxu0 0
    %576 = vmatpush2.bf16.msra.mxu0 0
    %577 = vmatprep.subr.bf16.mxu0 0
    %578 = vmatpush2.bf16.msra.mxu0 0
    %579 = vmatprep.subr.bf16.mxu0 0
    %580 = vmatpush2.bf16.msra.mxu0 0
    %581 = vmatprep.subr.bf16.mxu0 0
    %582 = vmatpush2.bf16.msra.mxu0 0
    %583 = vmatprep.mubr.bf16.mxu0 0
    %584 = vmatmul.mubr.bf16.gmra.mxu0 %v550
    %v585 = vpop.f32.mrf.mxu0
    %v586 = vadd.f32 0.0, %v585
    %v587 = vpop.f32.mrf.mxu0
    %v588 = vpop.f32.mrf.mxu0
    %v589 = vadd.f32 0.0, %v588
    %v590 = vpop.f32.mrf.mxu0
    %591 = vdwg.mxu0
    %p592 = scmp.eq.s32.totalorder 0, 0
    // Predicated region
    $region38: #{tpu_custom_call.1} parent=1 // pred_check
      %p593 = pneg %p592
    $region39: #{tpu_custom_call.1} parent=1 // pred_check_branch
      %595 = sbr.rel (%p593) target = $region41
    $region40: #{tpu_custom_call.1} parent=1 // pred_region
      %596 = vst [vmem:[#allocation7] sm:$0xff] %v586
      %597 = vst [vmem:[#allocation7 + $0x8] sm:$0xff] %v589
    $region41: #{tpu_custom_call.1} parent=1 // pred_fallthru
      _
    %p598 = scmp.ne.s32.totalorder 0, 0
    // Predicated region
    $region42: #{tpu_custom_call.1} parent=1 // pred_check
      %p599 = pneg %p598
    $region43: #{tpu_custom_call.1} parent=1 // pred_check_branch
      %601 = sbr.rel (%p599) target = $region45
    $region44: #{tpu_custom_call.1} parent=1 // pred_region
      %v602 = vld [vmem:[#allocation7] sm:$0xff]
      %v603 = vld [vmem:[#allocation7 + $0x8] sm:$0xff]
      %v604 = vadd.f32 %v602, %v586
      %v605 = vadd.f32 %v603, %v589
      %606 = vst [vmem:[#allocation7] sm:$0xff] %v604
      %607 = vst [vmem:[#allocation7 + $0x8] sm:$0xff] %v605
    $region45: #{tpu_custom_call.1} parent=1 // pred_fallthru
      _
    // Predicated region
    $region46: #{tpu_custom_call.1} parent=1 // pred_check
      %p608 = pneg %p592
    $region47: #{tpu_custom_call.1} parent=1 // pred_check_branch
      %610 = sbr.rel (%p608) target = $region49
    $region48: #{tpu_custom_call.1} parent=1 // pred_region
      %v611 = vld [vmem:[#allocation7] sm:$0xff]
      %v612 = vld [vmem:[#allocation7 + $0x8] sm:$0xff]
      %v613 = vld [vmem:[%s2] sm:$0x1]
      %v615 = vlaneseq
      %v616 = vshrl.u32 %v615, 7
      %v617 = vsub.s32 0, %v616
      %v618 = vrot.slane %v613, %v617
      %v620 = vmul.f32 %v611, %v618
      %v621 = vmul.f32 %v612, %v618
      %622 = vst [vmem:[#allocation7] sm:$0xff] %v620
      %623 = vst [vmem:[#allocation7 + $0x8] sm:$0xff] %v621
    $region49: #{tpu_custom_call.1} parent=1 // pred_fallthru
      _
    // Predicated region
    $region50: #{tpu_custom_call.1} parent=1 // pred_check
      _
    $region51: #{tpu_custom_call.1} parent=1 // pred_check_branch
      %625 = sbr.rel (0) target = $region53
    $region52: #{tpu_custom_call.1} parent=1 // pred_region
      %s627 = ssub.s32 256, 256
      %628 = vsyncadd [#allocation4], %s627
      %s629 = sshll.u32 [#allocation7], 4
      %s630 = int_to_ptr.vmem [resolvable:$true] %s629
      %635 = dma.vmem_to_hbm [thread:$0]  %s630, 256, %s3, [#allocation4], 128, 128, 8
    $region53: #{tpu_custom_call.1} parent=1 // pred_fallthru
      _
    // Predicated region
    $region54: #{tpu_custom_call.1} parent=1 // pred_check
      _
    $region55: #{tpu_custom_call.1} parent=1 // pred_check_branch
      %637 = sbr.rel (0) target = $region57
    $region56: #{tpu_custom_call.1} parent=1 // pred_region
      %638 = dma.done [#allocation4], 256
    $region57: #{tpu_custom_call.1} parent=1 // pred_fallthru
      _
    %639 = vsyncpa [#allocation3], 1
    %640 = vsyncpa [#allocation6], 1
    %641 = vsyncpa [#allocation4], 1

</llo_original>
